<compile_context>
chip_gen: v7x
topology: tpu7x:2x2x1
jax: 0.10.0
libtpu: 0.0.40
codegen_flags: <defaults>
</compile_context>

<pallas_src>
import functools

import jax
import jax.numpy as jnp
from jax.experimental import pallas as pl
from jax.experimental.pallas import tpu as pltpu

HIDDEN = 64          # LSTM hidden size (fixed by the PyTorch module)
GATE_PAD = 128       # each gate padded to one full 128-lane vreg
N_GATES = 3          # [i, g, o] -- forget gate is exactly dead because c0 == 0
H_PAD = 128          # hidden padded to 128 for the head matmul
OUT_PAD = 128        # head output padded to a lane-dense 128-wide slab


def _round_up(x, m):
    return (x + m - 1) // m * m


def lstm_head_kernel(x_ref, wih_ref, wout_ref, bout_ref, o_ref):
    GP = GATE_PAD
    # Single LSTM step, h0 = c0 = 0. The gate bias is already folded into the
    # matmul via the ones-column of x. Gate layout along lanes: [ i | g | o ],
    # 128 lanes each (lanes 64..127 of every gate are zero-weight padding).
    gates = jnp.dot(x_ref[...], wih_ref[...],
                    preferred_element_type=jnp.float32)            # (TB, 3*GP) f32
    i_g = jax.nn.sigmoid(gates[:, 0 * GP:1 * GP])                  # 128-lane aligned slices
    g_g = jnp.tanh(gates[:, 1 * GP:2 * GP])
    o_g = jax.nn.sigmoid(gates[:, 2 * GP:3 * GP])
    # c1 = i * g (forget-gate term vanishes). Padding lanes: 0.5 * tanh(0) == 0,
    # so h1's padding lanes are exactly zero.
    h1 = o_g * jnp.tanh(i_g * g_g)                                 # (TB, GP) f32
    # Linear head into a lane-dense 128-wide slab (classes live in lanes [:C]).
    o_ref[...] = jnp.dot(h1.astype(jnp.bfloat16), wout_ref[...],
                         preferred_element_type=jnp.float32) + bout_ref[...]


def rnn_forward(x, w_ih_aug, w_out_pad, b_out_pad, n_classes, *, tile_b=512):
    """x: (B, D_in) f32 -> (B, n_classes) f32."""
    B, d_in = x.shape
    d_aug = d_in + 1

    # Bias-fold ones column, pad the batch to the tile, cast the MXU operand to bf16.
    x_aug = jnp.concatenate([x, jnp.ones((B, 1), x.dtype)], axis=1)
    tb = min(tile_b, _round_up(B, 16))
    b_pad = _round_up(B, tb)
    if b_pad != B:
        x_aug = jnp.pad(x_aug, ((0, b_pad - B), (0, 0)))
    x_aug = x_aug.astype(jnp.bfloat16)

    out = pl.pallas_call(
        lstm_head_kernel,
        out_shape=jax.ShapeDtypeStruct((b_pad, OUT_PAD), jnp.float32),
        grid_spec=pltpu.PrefetchScalarGridSpec(
            num_scalar_prefetch=0,
            grid=(b_pad // tb,),
            in_specs=[
                pl.BlockSpec((tb, d_aug), lambda i: (i, 0)),                  # x tile
                pl.BlockSpec((d_aug, N_GATES * GATE_PAD), lambda i: (0, 0)),  # resident W_ih(+bias)
                pl.BlockSpec((H_PAD, OUT_PAD), lambda i: (0, 0)),             # resident W_out
                pl.BlockSpec((1, OUT_PAD), lambda i: (0, 0)),                 # resident b_out
            ],
            out_specs=pl.BlockSpec((tb, OUT_PAD), lambda i: (i, 0)),
        ),
        compiler_params=pltpu.CompilerParams(
            dimension_semantics=("parallel",)),
    )(x_aug, w_ih_aug, w_out_pad, b_out_pad)
    return out[:B, :n_classes]


def init_params(key, d_in, hidden, n_classes):
    # Mimics PyTorch's U(-1/sqrt(H), 1/sqrt(H)) init for LSTM + Linear.
    # W_hh is never sampled: it multiplies h0 == 0, so it cannot affect the output.
    ks = jax.random.split(key, 5)
    s = 1.0 / float(hidden) ** 0.5
    w_ih = jax.random.uniform(ks[0], (4 * hidden, d_in), jnp.float32, -s, s)
    b_ih = jax.random.uniform(ks[1], (4 * hidden,), jnp.float32, -s, s)
    b_hh = jax.random.uniform(ks[2], (4 * hidden,), jnp.float32, -s, s)
    w_out = jax.random.uniform(ks[3], (n_classes, hidden), jnp.float32, -s, s)
    b_out = jax.random.uniform(ks[4], (n_classes,), jnp.float32, -s, s)
    return w_ih, b_ih, b_hh, w_out, b_out


def preprocess_params(w_ih, b_ih, b_hh, w_out, b_out, hidden, n_classes):
    """Re-layout PyTorch-style params for the kernel.

    w_ih: (4H, D_in), b_ih/b_hh: (4H,), w_out: (C, H), b_out: (C,)
    Returns:
      w_ih_aug : (D_in + 1, 3*128) bf16  -- [i|g|o] gates, each lane-padded to 128,
                                            last row is the folded gate bias.
      w_out_pad: (128, 128) bf16         -- head weight, zero-padded rows/cols.
      b_out_pad: (1, 128) f32            -- head bias, zero-padded lanes.
    """
    H, GP = hidden, GATE_PAD
    b_gate = b_ih + b_hh                       # exact: h0 == 0 folds b_hh in
    keep = (0, 2, 3)                           # PyTorch order [i, f, g, o] -> keep i, g, o
    w_cols, b_cols = [], []
    for k in keep:
        wg = w_ih[k * H:(k + 1) * H, :].T      # (D_in, H)
        bg = b_gate[k * H:(k + 1) * H]         # (H,)
        w_cols.append(jnp.pad(wg, ((0, 0), (0, GP - H))))
        b_cols.append(jnp.pad(bg, (0, GP - H)))
    w3 = jnp.concatenate(w_cols, axis=1)       # (D_in, 3*GP)
    b3 = jnp.concatenate(b_cols)[None, :]      # (1, 3*GP)
    w_ih_aug = jnp.concatenate([w3, b3], axis=0).astype(jnp.bfloat16)

    w_out_pad = jnp.zeros((H_PAD, OUT_PAD), jnp.float32)
    w_out_pad = w_out_pad.at[:H, :n_classes].set(w_out.T).astype(jnp.bfloat16)
    b_out_pad = jnp.zeros((1, OUT_PAD), jnp.float32).at[0, :n_classes].set(b_out)
    return w_ih_aug, w_out_pad, b_out_pad


def reference_kernel_math(x, w_ih_aug, w_out_pad, b_out_pad, n_classes):
    """Plain-JAX mirror of the kernel's padded / bf16 math (tight check)."""
    GP = GATE_PAD
    B = x.shape[0]
    x_aug = jnp.concatenate([x, jnp.ones((B, 1), x.dtype)], axis=1).astype(jnp.bfloat16)
    gates = jnp.dot(x_aug.astype(jnp.float32), w_ih_aug.astype(jnp.float32))
    i = jax.nn.sigmoid(gates[:, 0 * GP:1 * GP])
    g = jnp.tanh(gates[:, 1 * GP:2 * GP])
    o = jax.nn.sigmoid(gates[:, 2 * GP:3 * GP])
    h = o * jnp.tanh(i * g)
    h = h.astype(jnp.bfloat16).astype(jnp.float32)
    out = jnp.dot(h, w_out_pad.astype(jnp.float32)) + b_out_pad
    return out[:, :n_classes]


def reference_pytorch_f32(x, w_ih, b_ih, b_hh, w_out, b_out, hidden):
    """Faithful f32 PyTorch semantics (all 4 gates, h0 = c0 = 0, seq_len = 1)."""
    H = hidden
    gates = x @ w_ih.T + b_ih + b_hh
    i = jax.nn.sigmoid(gates[:, 0 * H:1 * H])
    f = jax.nn.sigmoid(gates[:, 1 * H:2 * H])   # multiplies c0 == 0
    g = jnp.tanh(gates[:, 2 * H:3 * H])
    o = jax.nn.sigmoid(gates[:, 3 * H:4 * H])
    c1 = i * g + f * 0.0
    h1 = o * jnp.tanh(c1)
    return h1 @ w_out.T + b_out


if __name__ == "__main__":
    B, D_IN, N_CLASSES = 2, 16, 2   # D_IN stands in for X_train.shape[1]

    key = jax.random.PRNGKey(0)
    kx, kp = jax.random.split(key)
    x = jax.random.normal(kx, (B, D_IN), jnp.float32)

    w_ih, b_ih, b_hh, w_out, b_out = init_params(kp, D_IN, HIDDEN, N_CLASSES)
    w_ih_aug, w_out_pad, b_out_pad = preprocess_params(
        w_ih, b_ih, b_hh, w_out, b_out, HIDDEN, N_CLASSES)

    fwd = jax.jit(functools.partial(rnn_forward, n_classes=N_CLASSES))
    out = jax.block_until_ready(fwd(x, w_ih_aug, w_out_pad, b_out_pad))

    ref_exact = reference_kernel_math(x, w_ih_aug, w_out_pad, b_out_pad, N_CLASSES)
    ref_f32 = reference_pytorch_f32(x, w_ih, b_ih, b_hh, w_out, b_out, HIDDEN)

    assert out.shape == (B, N_CLASSES)
    assert jnp.allclose(out, ref_exact, atol=1e-4, rtol=1e-4), (
        f"max |diff| vs same-math reference = {jnp.max(jnp.abs(out - ref_exact))}")
    assert jnp.allclose(out, ref_f32, atol=5e-2, rtol=5e-2), (
        f"max |diff| vs f32 PyTorch reference = {jnp.max(jnp.abs(out - ref_f32))}")

    print("KERNEL_OK")
</pallas_src>

<mosaic_0001>
module attributes {stable_mosaic.version = 11 : i64} {
  func.func @lstm_head_kernel(%arg0: i32, %arg1: memref<16x17xbf16, #tpu.memory_space<vmem>>, %arg2: memref<17x384xbf16, #tpu.memory_space<vmem>>, %arg3: memref<128x128xbf16, #tpu.memory_space<vmem>>, %arg4: memref<1x128xf32, #tpu.memory_space<vmem>>, %arg5: memref<16x128xf32, #tpu.memory_space<vmem>>) attributes {dimension_semantics = [#tpu.dimension_semantics<parallel>], iteration_bounds = array<i64: 1>, scalar_prefetch = 0 : i64, scratch_operands = 0 : i64, tpu.core_type = #tpu.core_type<tc>, window_params = [{transform_indices = @transform_0, window_bounds = array<i64: 16, 17>}, {pipeline_mode = #tpu.pipeline_mode<synchronous>, transform_indices = @transform_1, window_bounds = array<i64: 17, 384>}, {pipeline_mode = #tpu.pipeline_mode<synchronous>, transform_indices = @transform_2, window_bounds = array<i64: 128, 128>}, {pipeline_mode = #tpu.pipeline_mode<synchronous>, transform_indices = @transform_3, window_bounds = array<i64: 1, 128>}, {transform_indices = @transform_4, window_bounds = array<i64: 16, 128>}]} {
    %c0 = arith.constant 0 : index
    %c0_0 = arith.constant 0 : index
    %0 = vector.load %arg1[%c0, %c0_0] : memref<16x17xbf16, #tpu.memory_space<vmem>>, vector<16x17xbf16>
    %c0_1 = arith.constant 0 : index
    %c0_2 = arith.constant 0 : index
    %1 = vector.load %arg2[%c0_1, %c0_2] : memref<17x384xbf16, #tpu.memory_space<vmem>>, vector<17x384xbf16>
    %cst = arith.constant dense<0.000000e+00> : vector<16x384xf32>
    %2 = tpu.matmul %0, %1, %cst {dimension_numbers = #tpu.dot_dimension_numbers<[1], [0], [0], [1], [0, 0, 1, 1], [], []>} : vector<16x17xbf16>, vector<17x384xbf16>, vector<16x384xf32> -> vector<16x384xf32>
    %3 = vector.extract_strided_slice %2 {offsets = [0, 0], sizes = [16, 128], strides = [1, 1]} : vector<16x384xf32> to vector<16x128xf32>
    %4 = arith.negf %3 : vector<16x128xf32>
    %5 = math.exp %4 : vector<16x128xf32>
    %cst_3 = arith.constant 1.000000e+00 : f32
    %6 = vector.broadcast %cst_3 : f32 to vector<16x128xf32>
    %7 = arith.addf %6, %5 : vector<16x128xf32>
    %8 = arith.divf %6, %7 : vector<16x128xf32>
    %9 = vector.extract_strided_slice %2 {offsets = [0, 128], sizes = [16, 128], strides = [1, 1]} : vector<16x384xf32> to vector<16x128xf32>
    %10 = math.tanh %9 : vector<16x128xf32>
    %11 = vector.extract_strided_slice %2 {offsets = [0, 256], sizes = [16, 128], strides = [1, 1]} : vector<16x384xf32> to vector<16x128xf32>
    %12 = arith.negf %11 : vector<16x128xf32>
    %13 = math.exp %12 : vector<16x128xf32>
    %cst_4 = arith.constant 1.000000e+00 : f32
    %14 = vector.broadcast %cst_4 : f32 to vector<16x128xf32>
    %15 = arith.addf %14, %13 : vector<16x128xf32>
    %16 = arith.divf %14, %15 : vector<16x128xf32>
    %17 = arith.mulf %8, %10 : vector<16x128xf32>
    %18 = math.tanh %17 : vector<16x128xf32>
    %19 = arith.mulf %16, %18 : vector<16x128xf32>
    %20 = arith.truncf %19 : vector<16x128xf32> to vector<16x128xbf16>
    %c0_5 = arith.constant 0 : index
    %c0_6 = arith.constant 0 : index
    %21 = vector.load %arg3[%c0_5, %c0_6] : memref<128x128xbf16, #tpu.memory_space<vmem>>, vector<128x128xbf16>
    %cst_7 = arith.constant dense<0.000000e+00> : vector<16x128xf32>
    %22 = tpu.matmul %20, %21, %cst_7 {dimension_numbers = #tpu.dot_dimension_numbers<[1], [0], [0], [1], [0, 0, 1, 1], [], []>} : vector<16x128xbf16>, vector<128x128xbf16>, vector<16x128xf32> -> vector<16x128xf32>
    %c0_8 = arith.constant 0 : index
    %c0_9 = arith.constant 0 : index
    %23 = vector.load %arg4[%c0_8, %c0_9] : memref<1x128xf32, #tpu.memory_space<vmem>>, vector<1x128xf32>
    %24 = vector.broadcast %23 : vector<1x128xf32> to vector<16x128xf32>
    %25 = arith.addf %22, %24 : vector<16x128xf32>
    %c0_10 = arith.constant 0 : index
    %c0_11 = arith.constant 0 : index
    %26 = vector.load %arg5[%c0_10, %c0_11] : memref<16x128xf32, #tpu.memory_space<vmem>>, vector<16x128xf32>
    tpu.vector_store %arg5[%c0_10, %c0_11], %25 {strides = array<i32>} : memref<16x128xf32, #tpu.memory_space<vmem>>, vector<16x128xf32>,
    return
  }
  func.func @transform_0(%arg0: i32) -> (i32, i32) {
    %c0_i32 = arith.constant 0 : i32
    %c0_i32_0 = arith.constant 0 : i32
    return %arg0, %c0_i32 : i32, i32
  }
  func.func @transform_1(%arg0: i32) -> (i32, i32) {
    %c0_i32 = arith.constant 0 : i32
    %c0_i32_0 = arith.constant 0 : i32
    %c0_i32_1 = arith.constant 0 : i32
    return %c0_i32, %c0_i32_0 : i32, i32
  }
  func.func @transform_2(%arg0: i32) -> (i32, i32) {
    %c0_i32 = arith.constant 0 : i32
    %c0_i32_0 = arith.constant 0 : i32
    %c0_i32_1 = arith.constant 0 : i32
    return %c0_i32, %c0_i32_0 : i32, i32
  }
  func.func @transform_3(%arg0: i32) -> (i32, i32) {
    %c0_i32 = arith.constant 0 : i32
    %c0_i32_0 = arith.constant 0 : i32
    %c0_i32_1 = arith.constant 0 : i32
    return %c0_i32, %c0_i32_0 : i32, i32
  }
  func.func @transform_4(%arg0: i32) -> (i32, i32) {
    %c0_i32 = arith.constant 0 : i32
    %c0_i32_0 = arith.constant 0 : i32
    return %arg0, %c0_i32 : i32, i32
  }
}

</mosaic_0001>

<llo_original>
// kernel: rnn_forward.1
$region0: #{rnn_forward.1}
  #allocation0 [shape = 'u32[]', space=smem, size = 0x4, offset = 0x4, fixed_abs, tag = 'smem constant byte address 0x4 - core index']
  #allocation1 [shape = 'u32[144,128]{1,0:T(1,128)}', space=vmem, size = 0x12000, scoped, tag = 'internal scratch']
  %s0 = inlined_call_operand.vmem [shape: bf16[16,17], index: 0, kind: input, shape index: {}]
  %s1 = inlined_call_operand.hbm [shape: bf16[17,384], index: 1, kind: input, shape index: {}]
  %s2 = inlined_call_operand.hbm [shape: bf16[128,128], index: 2, kind: input, shape index: {}]
  %s3 = inlined_call_operand.vmem [shape: f32[1,128], index: 3, kind: input, shape index: {}]
  %s4 = inlined_call_operand.vmem [shape: f32[16,128], index: 4, kind: output, shape index: {}]
  %s5 = sld [smem:[#allocation0]]
  $region34: #{rnn_forward.1} parent=0
    _
  %s7 = ssub.s32 1, %s5
  %s8 = scalar_select 0, %s7, %s5
  $region1: #{rnn_forward.1} parent=0
    #allocation2 [shape = 'u8[18432]{0}', space=vmem, size = 0x4800, scoped, tag = 'input window, operand 1, single buffered']
    #allocation3 [shape = 's32[1]{0}', space=sflag, size = 0x4, scoped, tag = 'scoped memory for rnn_forward.1']
    #allocation4 [shape = 'u8[32768]{0}', space=vmem, size = 0x8000, scoped, tag = 'input window, operand 2, single buffered']
    #allocation5 [shape = 's32[1]{0}', space=sflag, size = 0x4, scoped, tag = 'scoped memory for rnn_forward.1']
    %9 = vsyncpa [#allocation3], 0
    %10 = vsyncpa [#allocation5], 0
    // Predicated region
    $region2: #{rnn_forward.1} parent=1 // pred_check
      _
    $region3: #{rnn_forward.1} parent=1 // pred_check_branch
      %12 = sbr.rel (0) target = $region5
    $region4: #{rnn_forward.1} parent=1 // pred_region
      _
    $region5: #{rnn_forward.1} parent=1 // pred_fallthru
      _
    // Predicated region
    $region6: #{rnn_forward.1} parent=1 // pred_check
      _
    $region7: #{rnn_forward.1} parent=1 // pred_check_branch
      %14 = sbr.rel (0) target = $region9
    $region8: #{rnn_forward.1} parent=1 // pred_region
      %s16 = ssub.s32 576, 576
      %17 = vsyncadd [#allocation3], %s16
      %s18 = sshll.u32 [#allocation2], 4
      %s19 = int_to_ptr.vmem [resolvable:$true] %s18
      %24 = dma.hbm_to_vmem [thread:$0]  %s1, 576, %s19, [#allocation3], 192, 192, 12
    $region9: #{rnn_forward.1} parent=1 // pred_fallthru
      _
    // Predicated region
    $region10: #{rnn_forward.1} parent=1 // pred_check
      _
    $region11: #{rnn_forward.1} parent=1 // pred_check_branch
      %26 = sbr.rel (0) target = $region13
    $region12: #{rnn_forward.1} parent=1 // pred_region
      %s28 = ssub.s32 1024, 1024
      %29 = vsyncadd [#allocation5], %s28
      %s30 = sshll.u32 [#allocation4], 4
      %s31 = int_to_ptr.vmem [resolvable:$true] %s30
      %36 = dma.hbm_to_vmem [thread:$0]  %s2, 1024, %s31, [#allocation5], 64, 64, 4
    $region13: #{rnn_forward.1} parent=1 // pred_fallthru
      _
    // Predicated region
    $region14: #{rnn_forward.1} parent=1 // pred_check
      _
    $region15: #{rnn_forward.1} parent=1 // pred_check_branch
      %38 = sbr.rel (0) target = $region17
    $region16: #{rnn_forward.1} parent=1 // pred_region
      _
    $region17: #{rnn_forward.1} parent=1 // pred_fallthru
      _
    // Predicated region
    $region18: #{rnn_forward.1} parent=1 // pred_check
      _
    $region19: #{rnn_forward.1} parent=1 // pred_check_branch
      %40 = sbr.rel (0) target = $region21
    $region20: #{rnn_forward.1} parent=1 // pred_region
      %41 = dma.done [#allocation3], 576
    $region21: #{rnn_forward.1} parent=1 // pred_fallthru
      _
    // Predicated region
    $region22: #{rnn_forward.1} parent=1 // pred_check
      _
    $region23: #{rnn_forward.1} parent=1 // pred_check_branch
      %43 = sbr.rel (0) target = $region25
    $region24: #{rnn_forward.1} parent=1 // pred_region
      %44 = dma.done [#allocation5], 1024
    $region25: #{rnn_forward.1} parent=1 // pred_fallthru
      _
    %v46 = vld [vmem:[%s0] sm:$0xf]
    %v47 = vld [vmem:[%s0 + $0x4] sm:$0xf]
    %v48 = vld [vmem:[#allocation2] sm:$0xff]
    %v49 = vld [vmem:[#allocation2 + $0x8] sm:$0xf]
    %v50 = vld [vmem:[#allocation2 + $0xc] sm:$0xff]
    %v51 = vld [vmem:[#allocation2 + $0x14] sm:$0xf]
    %v52 = vld [vmem:[#allocation2 + $0x18] sm:$0x11]
    %v53 = vld [vmem:[#allocation2 + $0x20] sm:$0x1]
    %v56 = vunpack.c.l.b16 %v46
    %v57 = vunpack.c.l.b16 %v47
    %v58 = vpack.c.b16 %v57, %v56
    %v65 = vunpack.c.l.b16 %v48
    %v66 = vunpack.c.h.b16 %v48
    %v67 = vunpack.c.l.b16 %v49
    %v68 = vunpack.c.l.b16 %v50
    %v69 = vunpack.c.h.b16 %v50
    %v70 = vunpack.c.l.b16 %v51
    %v71 = vunpack.c.l.b16 %v52
    %v72 = vunpack.c.h.b16 %v52
    %v73 = vunpack.c.l.b16 %v53
    %v74 = vpack.c.b16 %v68, %v65
    %v75 = vpack.c.b16 %v69, %v66
    %v76 = vpack.c.b16 %v70, %v67
    %v77 = vpack.c.b16 %v71, %v71
    %v78 = vpack.c.b16 %v72, %v72
    %v79 = vpack.c.b16 %v73, %v73
    %vm83 = vcmask 138240
    %v85 = vsel %vm83, %v58, 0
    %vm87 = vcmask 1040384
    %v88 = vsel 0, 4294967295, 65535
    %v89 = vsel %vm87, %v88, 0
    %v91 = vand.u32 %v77, %v89
    %v94 = vand.u32 %v78, %v89
    %v97 = vand.u32 %v79, %v89
    %99 = vmatprep.subr.bf16.mxu0 %v75
    %100 = vmatpush1.bf16.msra.mxu0 %v74
    %101 = vmatprep.subr.bf16.mxu0 %v94
    %102 = vmatpush1.bf16.msra.mxu0 %v91
    %103 = vmatprep.subr.bf16.mxu0 0
    %104 = vmatpush1.bf16.msra.mxu0 0
    %105 = vmatprep.subr.bf16.mxu0 0
    %106 = vmatpush1.bf16.msra.mxu0 0
    %107 = vmatprep.subr.bf16.mxu0 0
    %108 = vmatpush1.bf16.msra.mxu0 0
    %109 = vmatprep.subr.bf16.mxu0 0
    %110 = vmatpush1.bf16.msra.mxu0 0
    %111 = vmatprep.subr.bf16.mxu0 0
    %112 = vmatpush1.bf16.msra.mxu0 0
    %113 = vmatprep.subr.bf16.mxu0 0
    %114 = vmatpush1.bf16.msra.mxu0 0
    %115 = vmatprep.subr.bf16.mxu0 0
    %116 = vmatpush1.bf16.msra.mxu0 0
    %117 = vmatprep.subr.bf16.mxu0 0
    %118 = vmatpush1.bf16.msra.mxu0 0
    %119 = vmatprep.subr.bf16.mxu0 0
    %120 = vmatpush1.bf16.msra.mxu0 0
    %121 = vmatprep.subr.bf16.mxu0 0
    %122 = vmatpush1.bf16.msra.mxu0 0
    %123 = vmatprep.subr.bf16.mxu0 0
    %124 = vmatpush1.bf16.msra.mxu0 0
    %125 = vmatprep.subr.bf16.mxu0 0
    %126 = vmatpush1.bf16.msra.mxu0 0
    %127 = vmatprep.subr.bf16.mxu0 0
    %128 = vmatpush1.bf16.msra.mxu0 0
    %129 = vmatprep.subr.bf16.mxu0 0
    %130 = vmatpush1.bf16.msra.mxu0 0
    %131 = vmatprep.mubr.bf16.mxu0 0
    %132 = vmatmul.mubr.bf16.gmra.mrb[0].mxu0 %v85
    %v133 = vpop.f32.mrb[0].mxu0
    %v134 = vadd.f32 0.0, %v133
    %v135 = vpop.f32.mrb[0].mxu0
    %v136 = vadd.f32 0.0, %v135
    %v137 = vpop.f32.mrb[0].mxu0
    %v138 = vadd.f32 0.0, %v137
    %v139 = vpop.f32.mrb[0].mxu0
    %v140 = vadd.f32 0.0, %v139
    %141 = vdwg.mxu0
    %142 = vmatprep.subr.bf16.mxu0 0
    %143 = vmatpush1.bf16.msra.mxu0 %v76
    %144 = vmatprep.subr.bf16.mxu0 0
    %145 = vmatpush1.bf16.msra.mxu0 %v97
    %146 = vmatprep.subr.bf16.mxu0 0
    %147 = vmatpush1.bf16.msra.mxu0 0
    %148 = vmatprep.subr.bf16.mxu0 0
    %149 = vmatpush1.bf16.msra.mxu0 0
    %150 = vmatprep.subr.bf16.mxu0 0
    %151 = vmatpush1.bf16.msra.mxu0 0
    %152 = vmatprep.subr.bf16.mxu0 0
    %153 = vmatpush1.bf16.msra.mxu0 0
    %154 = vmatprep.subr.bf16.mxu0 0
    %155 = vmatpush1.bf16.msra.mxu0 0
    %156 = vmatprep.subr.bf16.mxu0 0
    %157 = vmatpush1.bf16.msra.mxu0 0
    %158 = vmatprep.subr.bf16.mxu0 0
    %159 = vmatpush1.bf16.msra.mxu0 0
    %160 = vmatprep.subr.bf16.mxu0 0
    %161 = vmatpush1.bf16.msra.mxu0 0
    %162 = vmatprep.subr.bf16.mxu0 0
    %163 = vmatpush1.bf16.msra.mxu0 0
    %164 = vmatprep.subr.bf16.mxu0 0
    %165 = vmatpush1.bf16.msra.mxu0 0
    %166 = vmatprep.subr.bf16.mxu0 0
    %167 = vmatpush1.bf16.msra.mxu0 0
    %168 = vmatprep.subr.bf16.mxu0 0
    %169 = vmatpush1.bf16.msra.mxu0 0
    %170 = vmatprep.subr.bf16.mxu0 0
    %171 = vmatpush1.bf16.msra.mxu0 0
    %172 = vmatprep.subr.bf16.mxu0 0
    %173 = vmatpush1.bf16.msra.mxu0 0
    %174 = vmatprep.mubr.bf16.mxu0 0
    %175 = vmatmul.mubr.bf16.gmra.mrb[0].mxu0 %v85
    %v176 = vpop.f32.mrb[0].mxu0
    %v177 = vadd.f32 0.0, %v176
    %v178 = vpop.f32.mrb[0].mxu0
    %v179 = vpop.f32.mrb[0].mxu0
    %v180 = vadd.f32 0.0, %v179
    %v181 = vpop.f32.mrb[0].mxu0
    %182 = vdwg.mxu0
    %v183 = vxor.u32 %v134, 2147483648
    %v184 = vxor.u32 %v138, 2147483648
    %v185 = vmul.f32 %v183, 1.442695
    %v186 = vpow.pop %v185
    %v187 = vmul.f32 %v184, 1.442695
    %v188 = vpow.pop %v187
    %v189 = vadd.f32 %v186, 1.0
    %v190 = vadd.f32 %v188, 1.0
    %v191 = vrcp.pop %v189
    %v192 = vmul.f32 1.0, %v191
    %v193 = vrcp.pop %v190
    %v194 = vmul.f32 1.0, %v193
    %v195 = vtanh.pop %v136
    %v196 = vtanh.pop %v140
    %v197 = vxor.u32 %v177, 2147483648
    %v198 = vxor.u32 %v180, 2147483648
    %v199 = vmul.f32 %v197, 1.442695
    %v200 = vpow.pop %v199
    %v201 = vmul.f32 %v198, 1.442695
    %v202 = vpow.pop %v201
    %v203 = vadd.f32 %v200, 1.0
    %v204 = vadd.f32 %v202, 1.0
    %v205 = vrcp.pop %v203
    %v206 = vmul.f32 1.0, %v205
    %v207 = vrcp.pop %v204
    %v208 = vmul.f32 1.0, %v207
    %v209 = vmul.f32 %v192, %v195
    %v210 = vmul.f32 %v194, %v196
    %v211 = vtanh.pop %v209
    %v212 = vtanh.pop %v210
    %v213 = vmul.f32 %v206, %v211
    %v214 = vmul.f32 %v208, %v212
    %v215 = vpack.c.bf16 %v214, %v213
    %v216 = vld [vmem:[#allocation4] sm:$0xf]
    %v217 = vld [vmem:[#allocation4 + $0x4] sm:$0xf]
    %v218 = vld [vmem:[#allocation4 + $0x8] sm:$0xf]
    %v219 = vld [vmem:[#allocation4 + $0xc] sm:$0xf]
    %v220 = vld [vmem:[#allocation4 + $0x10] sm:$0xf]
    %v221 = vld [vmem:[#allocation4 + $0x14] sm:$0xf]
    %v222 = vld [vmem:[#allocation4 + $0x18] sm:$0xf]
    %v223 = vld [vmem:[#allocation4 + $0x1c] sm:$0xf]
    %v224 = vld [vmem:[#allocation4 + $0x20] sm:$0xf]
    %v225 = vld [vmem:[#allocation4 + $0x24] sm:$0xf]
    %v226 = vld [vmem:[#allocation4 + $0x28] sm:$0xf]
    %v227 = vld [vmem:[#allocation4 + $0x2c] sm:$0xf]
    %v228 = vld [vmem:[#allocation4 + $0x30] sm:$0xf]
    %v229 = vld [vmem:[#allocation4 + $0x34] sm:$0xf]
    %v230 = vld [vmem:[#allocation4 + $0x38] sm:$0xf]
    %v231 = vld [vmem:[#allocation4 + $0x3c] sm:$0xf]
    %v232 = vld [vmem:[%s3] sm:$0x1]
    %v234 = vlaneseq
    %v235 = vshrl.u32 %v234, 7
    %v236 = vsub.s32 0, %v235
    %v237 = vrot.slane %v232, %v236
    %v255 = vunpack.c.l.b16 %v216
    %v256 = vunpack.c.l.b16 %v217
    %v257 = vunpack.c.l.b16 %v218
    %v258 = vunpack.c.l.b16 %v219
    %v259 = vunpack.c.l.b16 %v220
    %v260 = vunpack.c.l.b16 %v221
    %v261 = vunpack.c.l.b16 %v222
    %v262 = vunpack.c.l.b16 %v223
    %v263 = vunpack.c.l.b16 %v224
    %v264 = vunpack.c.l.b16 %v225
    %v265 = vunpack.c.l.b16 %v226
    %v266 = vunpack.c.l.b16 %v227
    %v267 = vunpack.c.l.b16 %v228
    %v268 = vunpack.c.l.b16 %v229
    %v269 = vunpack.c.l.b16 %v230
    %v270 = vunpack.c.l.b16 %v231
    %v271 = vpack.c.b16 %v256, %v255
    %v272 = vpack.c.b16 %v258, %v257
    %v273 = vpack.c.b16 %v260, %v259
    %v274 = vpack.c.b16 %v262, %v261
    %v275 = vpack.c.b16 %v264, %v263
    %v276 = vpack.c.b16 %v266, %v265
    %v277 = vpack.c.b16 %v268, %v267
    %v278 = vpack.c.b16 %v270, %v269
    %287 = vmatprep.subr.bf16.mxu0 0
    %288 = vmatpush1.bf16.msra.mxu0 %v271
    %289 = vmatprep.subr.bf16.mxu0 0
    %290 = vmatpush1.bf16.msra.mxu0 %v272
    %291 = vmatprep.subr.bf16.mxu0 0
    %292 = vmatpush1.bf16.msra.mxu0 %v273
    %293 = vmatprep.subr.bf16.mxu0 0
    %294 = vmatpush1.bf16.msra.mxu0 %v274
    %295 = vmatprep.subr.bf16.mxu0 0
    %296 = vmatpush1.bf16.msra.mxu0 %v275
    %297 = vmatprep.subr.bf16.mxu0 0
    %298 = vmatpush1.bf16.msra.mxu0 %v276
    %299 = vmatprep.subr.bf16.mxu0 0
    %300 = vmatpush1.bf16.msra.mxu0 %v277
    %301 = vmatprep.subr.bf16.mxu0 0
    %302 = vmatpush1.bf16.msra.mxu0 %v278
    %303 = vmatprep.subr.bf16.mxu0 0
    %304 = vmatpush1.bf16.msra.mxu0 0
    %305 = vmatprep.subr.bf16.mxu0 0
    %306 = vmatpush1.bf16.msra.mxu0 0
    %307 = vmatprep.subr.bf16.mxu0 0
    %308 = vmatpush1.bf16.msra.mxu0 0
    %309 = vmatprep.subr.bf16.mxu0 0
    %310 = vmatpush1.bf16.msra.mxu0 0
    %311 = vmatprep.subr.bf16.mxu0 0
    %312 = vmatpush1.bf16.msra.mxu0 0
    %313 = vmatprep.subr.bf16.mxu0 0
    %314 = vmatpush1.bf16.msra.mxu0 0
    %315 = vmatprep.subr.bf16.mxu0 0
    %316 = vmatpush1.bf16.msra.mxu0 0
    %317 = vmatprep.subr.bf16.mxu0 0
    %318 = vmatpush1.bf16.msra.mxu0 0
    %319 = vmatprep.mubr.bf16.mxu0 0
    %320 = vmatmul.mubr.bf16.gmra.mrb[0].mxu0 %v215
    %v321 = vpop.f32.mrb[0].mxu0
    %v322 = vadd.f32 %v237, %v321
    %v323 = vpop.f32.mrb[0].mxu0
    %v324 = vpop.f32.mrb[0].mxu0
    %v325 = vadd.f32 %v237, %v324
    %v326 = vpop.f32.mrb[0].mxu0
    %327 = vdwg.mxu0
    %328 = vst [vmem:[%s4] sm:$0xff] %v322
    %329 = vst [vmem:[%s4 + $0x8] sm:$0xff] %v325
    // Predicated region
    $region26: #{rnn_forward.1} parent=1 // pred_check
      _
    $region27: #{rnn_forward.1} parent=1 // pred_check_branch
      %331 = sbr.rel (0) target = $region29
    $region28: #{rnn_forward.1} parent=1 // pred_region
      _
    $region29: #{rnn_forward.1} parent=1 // pred_fallthru
      _
    // Predicated region
    $region30: #{rnn_forward.1} parent=1 // pred_check
      _
    $region31: #{rnn_forward.1} parent=1 // pred_check_branch
      %333 = sbr.rel (0) target = $region33
    $region32: #{rnn_forward.1} parent=1 // pred_region
      _
    $region33: #{rnn_forward.1} parent=1 // pred_fallthru
      _
    %334 = vsyncpa [#allocation3], 1
    %335 = vsyncpa [#allocation5], 1

</llo_original>
